<compile_context>
chip_gen: v7x
topology: tpu7x:2x2x1
jax: 0.10.0
libtpu: 0.0.40
codegen_flags: <defaults>
</compile_context>

<pallas_src>
import functools

import jax
import jax.numpy as jnp
from jax.experimental import pallas as pl
from jax.experimental.pallas import tpu as pltpu


_LANE = 128
_SUBLANE = 8
_MAX_BLOCK_ROWS = 1024   # 1024 x 128 f32 = 512 KiB per block per array


def _weight_scale_kernel(x_ref, o_ref, *, scale):
    # Single full-width VPU multiply over the whole lane-dense tile.
    # `scale` is a static Python float, so it lowers to an immediate
    # (no SMEM traffic, no per-iteration broadcast).
    o_ref[...] = x_ref[...] * jnp.asarray(scale, dtype=o_ref.dtype)


def weight_scale(x, gain=2):
    """Forward pass of WeightScale: x * sqrt(gain / x.shape[1])."""
    scale = float(gain / x.shape[1]) ** 0.5

    total = x.size
    # Flatten to a lane-dense (rows, 128) slab; pad the tail with zeros.
    rows = -(-total // _LANE)                    # ceil(total / 128)
    rows = -(-rows // _SUBLANE) * _SUBLANE       # round up to sublane multiple
    block_rows = min(rows, _MAX_BLOCK_ROWS)
    grid_n = -(-rows // block_rows)
    rows = grid_n * block_rows
    padded_total = rows * _LANE

    x_flat = x.reshape(-1)
    if padded_total != total:
        x_flat = jnp.pad(x_flat, (0, padded_total - total))
    x2d = x_flat.reshape(rows, _LANE)

    kernel = functools.partial(_weight_scale_kernel, scale=scale)
    out2d = pl.pallas_call(
        kernel,
        out_shape=jax.ShapeDtypeStruct((rows, _LANE), x.dtype),
        grid=(grid_n,),
        in_specs=[pl.BlockSpec((block_rows, _LANE), lambda i: (i, 0))],
        out_specs=pl.BlockSpec((block_rows, _LANE), lambda i: (i, 0)),
        compiler_params=pltpu.CompilerParams(
            dimension_semantics=("parallel",)),
        cost_estimate=pl.CostEstimate(
            flops=total,
            transcendentals=0,
            bytes_accessed=2 * total * x.dtype.itemsize),
    )(x2d)

    out_flat = out2d.reshape(-1)
    if padded_total != total:
        out_flat = out_flat[:total]
    return out_flat.reshape(x.shape)


if __name__ == "__main__":
    key = jax.random.PRNGKey(0)
    N, C, H, W = 2, 4, 16, 16
    x = jax.random.normal(key, (N, C, H, W), dtype=jnp.float32)

    out = weight_scale(x, gain=2)
    out = jax.block_until_ready(out)

    # Reference: WeightScale.forward(x, gain=2) == x * sqrt(gain / C)
    ref = x * ((2.0 / C) ** 0.5)
    assert out.shape == x.shape
    assert jnp.allclose(out, ref, atol=1e-6, rtol=1e-6), "mismatch vs reference"

    print("KERNEL_OK")
</pallas_src>

<mosaic_0001>
module attributes {stable_mosaic.version = 11 : i64} {
  func.func @_weight_scale_kernel(%arg0: i32, %arg1: memref<16x128xf32, #tpu.memory_space<vmem>>, %arg2: memref<16x128xf32, #tpu.memory_space<vmem>>) attributes {dimension_semantics = [#tpu.dimension_semantics<parallel>], iteration_bounds = array<i64: 1>, scalar_prefetch = 0 : i64, scratch_operands = 0 : i64, tpu.core_type = #tpu.core_type<tc>, window_params = [{transform_indices = @transform_0, window_bounds = array<i64: 16, 128>}, {transform_indices = @transform_1, window_bounds = array<i64: 16, 128>}]} {
    %c0 = arith.constant 0 : index
    %c0_0 = arith.constant 0 : index
    %0 = vector.load %arg1[%c0, %c0_0] : memref<16x128xf32, #tpu.memory_space<vmem>>, vector<16x128xf32>
    %cst = arith.constant 0.707106769 : f32
    %1 = vector.broadcast %cst : f32 to vector<16x128xf32>
    %2 = arith.mulf %0, %1 : vector<16x128xf32>
    %c0_1 = arith.constant 0 : index
    %c0_2 = arith.constant 0 : index
    %3 = vector.load %arg2[%c0_1, %c0_2] : memref<16x128xf32, #tpu.memory_space<vmem>>, vector<16x128xf32>
    tpu.vector_store %arg2[%c0_1, %c0_2], %2 {strides = array<i32>} : memref<16x128xf32, #tpu.memory_space<vmem>>, vector<16x128xf32>,
    return
  }
  func.func @transform_0(%arg0: i32) -> (i32, i32) {
    %c0_i32 = arith.constant 0 : i32
    %c0_i32_0 = arith.constant 0 : i32
    return %arg0, %c0_i32 : i32, i32
  }
  func.func @transform_1(%arg0: i32) -> (i32, i32) {
    %c0_i32 = arith.constant 0 : i32
    %c0_i32_0 = arith.constant 0 : i32
    return %arg0, %c0_i32 : i32, i32
  }
}

</mosaic_0001>

<llo_original>
// kernel: tpu_custom_call.1
$region0: #{tpu_custom_call.1}
  #allocation0 [shape = 'u32[]', space=smem, size = 0x4, offset = 0x4, fixed_abs, tag = 'smem constant byte address 0x4 - core index']
  #allocation1 [shape = 'u32[144,128]{1,0:T(1,128)}', space=vmem, size = 0x12000, scoped, tag = 'internal scratch']
  %s0 = inlined_call_operand.hbm [shape: f32[16,128], index: 0, kind: input, shape index: {}]
  %s1 = inlined_call_operand.hbm [shape: f32[16,128], index: 1, kind: output, shape index: {}]
  %s2 = sld [smem:[#allocation0]]
  $region18: #{tpu_custom_call.1} parent=0
    _
  %s4 = ssub.s32 1, %s2
  %s5 = scalar_select 0, %s4, %s2
  $region1: #{tpu_custom_call.1} parent=0
    #allocation2 [shape = 'u8[8192]{0}', space=vmem, size = 0x2000, scoped, tag = 'input window, operand 0, single buffered']
    #allocation3 [shape = 's32[1]{0}', space=sflag, size = 0x4, scoped, tag = 'scoped memory for tpu_custom_call.1']
    #allocation4 [shape = 's32[1]{0}', space=sflag, size = 0x4, scoped, tag = 'scoped memory for tpu_custom_call.1']
    #allocation5 [shape = 'u8[8192]{0}', space=vmem, size = 0x2000, scoped, tag = 'output window, operand 0, single buffered']
    %6 = vsyncpa [#allocation3], 0
    %7 = vsyncpa [#allocation4], 0
    // Predicated region
    $region2: #{tpu_custom_call.1} parent=1 // pred_check
      _
    $region3: #{tpu_custom_call.1} parent=1 // pred_check_branch
      %9 = sbr.rel (0) target = $region5
    $region4: #{tpu_custom_call.1} parent=1 // pred_region
      %s11 = ssub.s32 256, 256
      %12 = vsyncadd [#allocation3], %s11
      %s13 = sshll.u32 [#allocation2], 4
      %s14 = int_to_ptr.vmem [resolvable:$true] %s13
      %19 = dma.hbm_to_vmem [thread:$0]  %s0, 256, %s14, [#allocation3], 128, 128, 8
    $region5: #{tpu_custom_call.1} parent=1 // pred_fallthru
      _
    // Predicated region
    $region6: #{tpu_custom_call.1} parent=1 // pred_check
      _
    $region7: #{tpu_custom_call.1} parent=1 // pred_check_branch
      %21 = sbr.rel (0) target = $region9
    $region8: #{tpu_custom_call.1} parent=1 // pred_region
      %22 = dma.done [#allocation3], 256
    $region9: #{tpu_custom_call.1} parent=1 // pred_fallthru
      _
    %v23 = vld [vmem:[#allocation2] sm:$0xff]
    %v24 = vld [vmem:[#allocation2 + $0x8] sm:$0xff]
    %v25 = vmul.f32 %v23, 0.70710677
    %v26 = vmul.f32 %v24, 0.70710677
    %27 = vst [vmem:[#allocation5] sm:$0xff] %v25
    %28 = vst [vmem:[#allocation5 + $0x8] sm:$0xff] %v26
    // Predicated region
    $region10: #{tpu_custom_call.1} parent=1 // pred_check
      _
    $region11: #{tpu_custom_call.1} parent=1 // pred_check_branch
      %30 = sbr.rel (0) target = $region13
    $region12: #{tpu_custom_call.1} parent=1 // pred_region
      %s32 = ssub.s32 256, 256
      %33 = vsyncadd [#allocation4], %s32
      %s34 = sshll.u32 [#allocation5], 4
      %s35 = int_to_ptr.vmem [resolvable:$true] %s34
      %40 = dma.vmem_to_hbm [thread:$0]  %s35, 256, %s1, [#allocation4], 128, 128, 8
    $region13: #{tpu_custom_call.1} parent=1 // pred_fallthru
      _
    // Predicated region
    $region14: #{tpu_custom_call.1} parent=1 // pred_check
      _
    $region15: #{tpu_custom_call.1} parent=1 // pred_check_branch
      %42 = sbr.rel (0) target = $region17
    $region16: #{tpu_custom_call.1} parent=1 // pred_region
      %43 = dma.done [#allocation4], 256
    $region17: #{tpu_custom_call.1} parent=1 // pred_fallthru
      _
    %44 = vsyncpa [#allocation3], 1
    %45 = vsyncpa [#allocation4], 1

</llo_original>
